<compile_context>
chip_gen: v7x
topology: tpu7x:2x2x1
jax: 0.10.0
libtpu: 0.0.40
codegen_flags: <defaults>
</compile_context>

<pallas_src>
import functools

import numpy as np
import jax
import jax.numpy as jnp
from jax.experimental import pallas as pl
from jax.experimental.pallas import tpu as pltpu


# ----------------------------- Pallas kernel -----------------------------

def _gcn_kernel(adj_ref, x_ref, w_ref, b_ref, out_ref, support_ref, *,
                compute_dtype):
    # adj_ref:     (1, TN, N)    current adjacency row tile of batch b
    # x_ref:       (1, N, Din)   full node features of batch b
    # w_ref:       (Din, Dout)   shared weight
    # b_ref:       (1, Dout)     bias (f32)
    # out_ref:     (1, TN, Dout)
    # support_ref: (N, Dout)     VMEM scratch in compute_dtype, resident
    #                            across the row-tile ("arbitrary") grid axis.

    @pl.when(pl.program_id(1) == 0)
    def _():
        # support = X @ W -- computed once per batch element, stays in VMEM.
        x = x_ref[0].astype(compute_dtype)
        w = w_ref[...].astype(compute_dtype)
        support_ref[...] = jnp.dot(
            x, w, preferred_element_type=jnp.float32
        ).astype(support_ref.dtype)

    adj = adj_ref[0].astype(compute_dtype)
    out = jnp.dot(adj, support_ref[...],
                  preferred_element_type=jnp.float32)       # (TN, Dout) f32
    out_ref[0] = (out + b_ref[...]).astype(out_ref.dtype)


# ----------------------------- wrapper -----------------------------

def _pick_row_tile(n):
    for t in (1024, 512, 256, 128):
        if n % t == 0:
            return t
    return n  # small graphs: one full-row tile (block == full dim is legal)


def graph_convolution(adjacency, input_feature, weight, bias=None,
                      compute_dtype=jnp.bfloat16):
    """output[b] = adjacency[b] @ (input_feature[b] @ weight) + bias."""
    B, N, Din = input_feature.shape
    Dout = weight.shape[1]
    assert adjacency.shape == (B, N, N)

    tn = _pick_row_tile(N)
    grid = (B, N // tn)

    if bias is None:
        bias = jnp.zeros((Dout,), jnp.float32)
    bias2d = jnp.asarray(bias, jnp.float32).reshape(1, Dout)

    kernel = functools.partial(_gcn_kernel, compute_dtype=compute_dtype)

    cd_bytes = jnp.dtype(compute_dtype).itemsize
    # VMEM estimate: double-buffered blocks + resident scratch.
    est = (2 * tn * N * adjacency.dtype.itemsize            # adjacency tile
           + 2 * N * Din * input_feature.dtype.itemsize     # features
           + 2 * Din * Dout * weight.dtype.itemsize         # weight
           + 2 * tn * Dout * 4                              # output tile (f32)
           + N * Dout * cd_bytes)                           # support scratch
    compiler_kwargs = dict(dimension_semantics=("parallel", "arbitrary"))
    if est > 16 * 1024 * 1024:
        # Stay comfortably inside v7x's 64 MiB physical VMEM.
        compiler_kwargs["vmem_limit_bytes"] = min(int(est * 1.5),
                                                  48 * 1024 * 1024)

    return pl.pallas_call(
        kernel,
        out_shape=jax.ShapeDtypeStruct((B, N, Dout), jnp.float32),
        grid=grid,
        in_specs=[
            pl.BlockSpec((1, tn, N), lambda b, i: (b, i, 0)),     # adjacency
            pl.BlockSpec((1, N, Din), lambda b, i: (b, 0, 0)),    # features
            pl.BlockSpec((Din, Dout), lambda b, i: (0, 0)),       # weight
            pl.BlockSpec((1, Dout), lambda b, i: (0, 0)),         # bias
        ],
        out_specs=pl.BlockSpec((1, tn, Dout), lambda b, i: (b, i, 0)),
        scratch_shapes=[pltpu.VMEM((N, Dout), compute_dtype)],
        compiler_params=pltpu.CompilerParams(**compiler_kwargs),
    )(adjacency, input_feature, weight, bias2d)


# ----------------------------- params / reference -----------------------------

def init_params(key, input_dim, output_dim, use_bias=True):
    # PyTorch init.kaiming_uniform_ on a (input_dim, output_dim) tensor:
    # fan_in = size(1) = output_dim, gain = sqrt(2) -> bound = sqrt(6 / fan_in).
    bound = float(np.sqrt(6.0 / output_dim))
    w = jax.random.uniform(key, (input_dim, output_dim), jnp.float32,
                           -bound, bound)
    weight = w.astype(jnp.bfloat16)          # store MXU weights in bf16
    bias = jnp.zeros((output_dim,), jnp.float32) if use_bias else None
    return weight, bias


def reference_forward(adjacency, input_feature, weight, bias):
    w = weight.astype(jnp.float32)
    support = jnp.einsum('bnd,do->bno', input_feature, w)
    out = jnp.einsum('bmn,bno->bmo', adjacency, support)
    if bias is not None:
        out = out + bias
    return out


# ----------------------------- main -----------------------------

if __name__ == "__main__":
    B, N, Din, Dout = 2, 16, 32, 32
    key = jax.random.PRNGKey(0)
    ka, kx, kw = jax.random.split(key, 3)

    # Dense stand-in for the sparse adjacency: random edges + self loops,
    # row-normalized (typical GCN normalized-Laplacian-style operator).
    edges = (jax.random.uniform(ka, (B, N, N)) > 0.7).astype(jnp.float32)
    adjacency = edges + jnp.eye(N, dtype=jnp.float32)[None]
    adjacency = adjacency / jnp.sum(adjacency, axis=-1, keepdims=True)

    input_feature = jax.random.normal(kx, (B, N, Din), jnp.float32)
    weight, bias = init_params(kw, Din, Dout, use_bias=True)

    out = graph_convolution(adjacency, input_feature, weight, bias)
    out = jax.block_until_ready(out)

    ref = reference_forward(adjacency, input_feature, weight, bias)
    assert out.shape == (B, N, Dout)
    assert np.allclose(np.asarray(out), np.asarray(ref), rtol=2e-2, atol=2e-2)
    print("KERNEL_OK")
</pallas_src>

<mosaic_0001>
module attributes {stable_mosaic.version = 11 : i64} {
  func.func @_gcn_kernel(%arg0: i32, %arg1: i32, %arg2: memref<1x16x16xf32, #tpu.memory_space<vmem>>, %arg3: memref<1x16x32xf32, #tpu.memory_space<vmem>>, %arg4: memref<32x32xbf16, #tpu.memory_space<vmem>>, %arg5: memref<1x32xf32, #tpu.memory_space<vmem>>, %arg6: memref<1x16x32xf32, #tpu.memory_space<vmem>>, %arg7: memref<16x32xbf16, #tpu.memory_space<vmem>>) attributes {dimension_semantics = [#tpu.dimension_semantics<parallel>, #tpu.dimension_semantics<arbitrary>], iteration_bounds = array<i64: 2, 1>, scalar_prefetch = 0 : i64, scratch_operands = 1 : i64, tpu.core_type = #tpu.core_type<tc>, window_params = [{transform_indices = @transform_0, window_bounds = array<i64: 1, 16, 16>}, {transform_indices = @transform_1, window_bounds = array<i64: 1, 16, 32>}, {pipeline_mode = #tpu.pipeline_mode<synchronous>, transform_indices = @transform_2, window_bounds = array<i64: 32, 32>}, {pipeline_mode = #tpu.pipeline_mode<synchronous>, transform_indices = @transform_3, window_bounds = array<i64: 1, 32>}, {transform_indices = @transform_4, window_bounds = array<i64: 1, 16, 32>}]} {
    %c0_i32 = arith.constant 0 : i32
    %0 = arith.cmpi eq, %arg1, %c0_i32 : i32
    %1 = arith.extui %0 : i1 to i32
    %c0_i32_0 = arith.constant 0 : i32
    %2 = arith.cmpi ne, %1, %c0_i32_0 : i32
    scf.if %2 {
      %c0_10 = arith.constant 0 : index
      %c0_11 = arith.constant 0 : index
      %c0_12 = arith.constant 0 : index
      %14 = vector.load %arg3[%c0_10, %c0_11, %c0_12] : memref<1x16x32xf32, #tpu.memory_space<vmem>>, vector<1x16x32xf32>
      %15 = vector.shape_cast %14 : vector<1x16x32xf32> to vector<16x32xf32>
      %16 = arith.truncf %15 : vector<16x32xf32> to vector<16x32xbf16>
      %c0_13 = arith.constant 0 : index
      %c0_14 = arith.constant 0 : index
      %17 = vector.load %arg4[%c0_13, %c0_14] : memref<32x32xbf16, #tpu.memory_space<vmem>>, vector<32x32xbf16>
      %cst_15 = arith.constant dense<0.000000e+00> : vector<16x32xf32>
      %18 = tpu.matmul %16, %17, %cst_15 {dimension_numbers = #tpu.dot_dimension_numbers<[1], [0], [0], [1], [0, 0, 1, 1], [], []>} : vector<16x32xbf16>, vector<32x32xbf16>, vector<16x32xf32> -> vector<16x32xf32>
      %19 = arith.truncf %18 : vector<16x32xf32> to vector<16x32xbf16>
      %c0_16 = arith.constant 0 : index
      %c0_17 = arith.constant 0 : index
      %20 = vector.load %arg7[%c0_16, %c0_17] : memref<16x32xbf16, #tpu.memory_space<vmem>>, vector<16x32xbf16>
      tpu.vector_store %arg7[%c0_16, %c0_17], %19 {strides = array<i32>} : memref<16x32xbf16, #tpu.memory_space<vmem>>, vector<16x32xbf16>,
    } else {
    }
    %c0 = arith.constant 0 : index
    %c0_1 = arith.constant 0 : index
    %c0_2 = arith.constant 0 : index
    %3 = vector.load %arg2[%c0, %c0_1, %c0_2] : memref<1x16x16xf32, #tpu.memory_space<vmem>>, vector<1x16x16xf32>
    %4 = vector.shape_cast %3 : vector<1x16x16xf32> to vector<16x16xf32>
    %5 = arith.truncf %4 : vector<16x16xf32> to vector<16x16xbf16>
    %c0_3 = arith.constant 0 : index
    %c0_4 = arith.constant 0 : index
    %6 = vector.load %arg7[%c0_3, %c0_4] : memref<16x32xbf16, #tpu.memory_space<vmem>>, vector<16x32xbf16>
    %cst = arith.constant dense<0.000000e+00> : vector<16x32xf32>
    %7 = tpu.matmul %5, %6, %cst {dimension_numbers = #tpu.dot_dimension_numbers<[1], [0], [0], [1], [0, 0, 1, 1], [], []>} : vector<16x16xbf16>, vector<16x32xbf16>, vector<16x32xf32> -> vector<16x32xf32>
    %c0_5 = arith.constant 0 : index
    %c0_6 = arith.constant 0 : index
    %8 = vector.load %arg5[%c0_5, %c0_6] : memref<1x32xf32, #tpu.memory_space<vmem>>, vector<1x32xf32>
    %9 = vector.broadcast %8 : vector<1x32xf32> to vector<16x32xf32>
    %10 = arith.addf %7, %9 : vector<16x32xf32>
    %c0_7 = arith.constant 0 : index
    %c0_8 = arith.constant 0 : index
    %c0_9 = arith.constant 0 : index
    %11 = vector.load %arg6[%c0_7, %c0_8, %c0_9] : memref<1x16x32xf32, #tpu.memory_space<vmem>>, vector<1x16x32xf32>
    %12 = vector.shape_cast %11 : vector<1x16x32xf32> to vector<16x32xf32>
    %13 = vector.shape_cast %10 : vector<16x32xf32> to vector<1x16x32xf32>
    tpu.vector_store %arg6[%c0_7, %c0_8, %c0_9], %13 {strides = array<i32>} : memref<1x16x32xf32, #tpu.memory_space<vmem>>, vector<1x16x32xf32>,
    return
  }
  func.func @transform_0(%arg0: i32, %arg1: i32) -> (i32, i32, i32) {
    %c0_i32 = arith.constant 0 : i32
    %c0_i32_0 = arith.constant 0 : i32
    return %arg0, %arg1, %c0_i32 : i32, i32, i32
  }
  func.func @transform_1(%arg0: i32, %arg1: i32) -> (i32, i32, i32) {
    %c0_i32 = arith.constant 0 : i32
    %c0_i32_0 = arith.constant 0 : i32
    %c0_i32_1 = arith.constant 0 : i32
    return %arg0, %c0_i32, %c0_i32_0 : i32, i32, i32
  }
  func.func @transform_2(%arg0: i32, %arg1: i32) -> (i32, i32) {
    %c0_i32 = arith.constant 0 : i32
    %c0_i32_0 = arith.constant 0 : i32
    %c0_i32_1 = arith.constant 0 : i32
    return %c0_i32, %c0_i32_0 : i32, i32
  }
  func.func @transform_3(%arg0: i32, %arg1: i32) -> (i32, i32) {
    %c0_i32 = arith.constant 0 : i32
    %c0_i32_0 = arith.constant 0 : i32
    %c0_i32_1 = arith.constant 0 : i32
    return %c0_i32, %c0_i32_0 : i32, i32
  }
  func.func @transform_4(%arg0: i32, %arg1: i32) -> (i32, i32, i32) {
    %c0_i32 = arith.constant 0 : i32
    %c0_i32_0 = arith.constant 0 : i32
    return %arg0, %arg1, %c0_i32 : i32, i32, i32
  }
}

</mosaic_0001>

<llo_original>
// kernel: tpu_custom_call.1
$region0: #{tpu_custom_call.1}
  #allocation0 [shape = 'u32[]', space=smem, size = 0x4, offset = 0x4, fixed_abs, tag = 'smem constant byte address 0x4 - core index']
  #allocation1 [shape = 'u32[144,128]{1,0:T(1,128)}', space=vmem, size = 0x12000, scoped, tag = 'internal scratch']
  #allocation2 [shape = 'bf16[16,32]{1,0:T(16,128)(2,1)}', space=vmem, size = 0x1000, scoped, tag = 'scratch operand']
  %s0 = inlined_call_operand.hbm [shape: f32[2,16,16], index: 0, kind: input, shape index: {}]
  %s1 = inlined_call_operand.hbm [shape: f32[2,16,32], index: 1, kind: input, shape index: {}]
  %s2 = inlined_call_operand.hbm [shape: bf16[32,32], index: 2, kind: input, shape index: {}]
  %s3 = inlined_call_operand.vmem [shape: f32[1,32], index: 3, kind: input, shape index: {}]
  %s4 = inlined_call_operand.hbm [shape: f32[2,16,32], index: 4, kind: output, shape index: {}]
  %s5 = sld [smem:[#allocation0]]
  $region65: #{tpu_custom_call.1} parent=0
    _
  %s7 = ssub.s32 1, %s5
  %s8 = scalar_select 0, %s7, %s5
  $region1: #{tpu_custom_call.1} parent=0
    #allocation3 [shape = 'u8[16384]{0}', space=vmem, size = 0x4000, scoped, tag = 'input window, operand 0']
    #allocation4 [shape = 's32[2]{0}', space=sflag, size = 0x8, scoped, tag = 'scoped memory for tpu_custom_call.1']
    #allocation5 [shape = 's32[2]{0}', space=sflag, size = 0x8, scoped, tag = 'scoped memory for tpu_custom_call.1']
    #allocation6 [shape = 'u8[16384]{0}', space=vmem, size = 0x4000, scoped, tag = 'input window, operand 1']
    #allocation7 [shape = 's32[2]{0}', space=sflag, size = 0x8, scoped, tag = 'scoped memory for tpu_custom_call.1']
    #allocation8 [shape = 'u8[8192]{0}', space=vmem, size = 0x2000, scoped, tag = 'input window, operand 2, single buffered']
    #allocation9 [shape = 'u8[16384]{0}', space=vmem, size = 0x4000, scoped, tag = 'output window, operand 0']
    %9 = vsyncpa [#allocation4], 0
    %s10 = scalar_lea.sflag [#allocation4], 1
    %11 = vsyncpa %s10, 0
    %12 = vsyncpa [#allocation7], 0
    %s13 = scalar_lea.sflag [#allocation7], 1
    %14 = vsyncpa %s13, 0
    %15 = vsyncpa [#allocation5], 0
    %s16 = scalar_lea.sflag [#allocation5], 1
    %17 = vsyncpa %s16, 0
    loop: start=0, step=1, limit=4
    $region2: #{tpu_custom_call.1} parent=1 // loop_pre_header
      _
    $region3: #{tpu_custom_call.1} parent=1 // loop_header
      %s19 = sphi 0, %s23
      %p20 = scmp.ge.s32.totalorder %s19, 4
      %s26 = sphi 0, %s38
      %s27 = sphi 0, %s34
      %s28 = sphi 0, %s26
      %s29 = sphi 0, %s27
      %s30 = sphi 0, %s28
      %s31 = sphi 0, %s29
      %s43 = sphi 0, %s45
      %s46 = sphi 0, %s43
      %s47 = sphi 0, %s46
      %s63 = sphi 0, %s47
      %s69 = sphi 0, %s71
      %s72 = sphi 0, %s69
      %s73 = sphi 0, %s72
      %s89 = sphi 0, %s73
      %s93 = sphi 0, %s93
      %s95 = sphi 0, %s93
      %s96 = sphi 0, %s95
      %s110 = sphi 0, %s96
      %s114 = sphi 0, %s114
      %s116 = sphi 0, %s114
      %s117 = sphi 0, %s116
      %s131 = sphi 0, %s117
      %s139 = sphi 0, %s141
      %s142 = sphi 0, %s139
      %s143 = sphi 0, %s142
      %s159 = sphi 0, %s143
    $region4: #{tpu_custom_call.1} parent=1 // loop_header_branch
      %22 = sbr.rel (%p20) target = $region8
    $region5: #{tpu_custom_call.1} parent=1 // loop_body
      %s24 = ssub.s32 %s19, 1
      %s25 = ssub.s32 %s19, 2
      %s32 = sadd.s32 1, %s27
      %p33 = scmp.ge.s32.totalorder %s32, 1
      %s34 = scalar_select %p33, 0, %s32
      %s35 = sadd.s32 1, %s26
      %s36 = scalar_select %p33, %s35, %s26
      %p37 = scmp.ge.s32.totalorder %s36, 2
      %s38 = scalar_select %p37, 0, %s36
      %s39 = ssub.s32 %s26, %s38
      %s40 = ssub.s32 %s27, %s34
      %s41 = sor.u32 %s39, %s40
      %p42 = scmp.eq.s32.totalorder %s41, 0
      %s44 = sadd.s32 %s43, 1
      %s45 = scalar_select %p42, %s43, %s44
      %p48 = pneg %p42
      %p49 = scmp.eq.s32.totalorder %s19, 1
      %p50 = por %p48, %p49
      %p51 = scmp.ne.s32.totalorder %s43, %s46
      %p52 = scmp.eq.s32.totalorder %s19, 0
      %p53 = por %p51, %p52
      %p54 = scmp.ne.s32.totalorder %s43, %s46
      %p55 = scmp.eq.s32.totalorder %s24, 1
      %p56 = por %p54, %p55
      %p57 = scmp.ne.s32.totalorder %s46, %s47
      %p58 = scmp.eq.s32.totalorder %s24, 0
      %p59 = por %p57, %p58
      %p60 = scmp.ne.s32.totalorder %s46, %s47
      %p61 = scmp.eq.s32.totalorder %s25, 1
      %p62 = por %p60, %p61
      %p64 = scmp.ne.s32.totalorder %s47, %s63
      %p65 = scmp.eq.s32.totalorder %s25, 0
      %p66 = por %p64, %p65
      %s67 = ssub.s32 %s26, %s38
      %p68 = scmp.eq.s32.totalorder %s67, 0
      %s70 = sadd.s32 %s69, 1
      %s71 = scalar_select %p68, %s69, %s70
      %p74 = pneg %p68
      %p75 = scmp.eq.s32.totalorder %s19, 1
      %p76 = por %p74, %p75
      %p77 = scmp.ne.s32.totalorder %s69, %s72
      %p78 = scmp.eq.s32.totalorder %s19, 0
      %p79 = por %p77, %p78
      %p80 = scmp.ne.s32.totalorder %s69, %s72
      %p81 = scmp.eq.s32.totalorder %s24, 1
      %p82 = por %p80, %p81
      %p83 = scmp.ne.s32.totalorder %s72, %s73
      %p84 = scmp.eq.s32.totalorder %s24, 0
      %p85 = por %p83, %p84
      %p86 = scmp.ne.s32.totalorder %s72, %s73
      %p87 = scmp.eq.s32.totalorder %s25, 1
      %p88 = por %p86, %p87
      %p90 = scmp.ne.s32.totalorder %s73, %s89
      %p91 = scmp.eq.s32.totalorder %s25, 0
      %p92 = por %p90, %p91
      %s94 = sadd.s32 %s93, 1
      %p97 = scmp.eq.s32.totalorder %s19, 1
      %p98 = scmp.ne.s32.totalorder %s93, %s95
      %p99 = scmp.eq.s32.totalorder %s19, 0
      %p100 = por %p98, %p99
      %p101 = scmp.ne.s32.totalorder %s93, %s95
      %p102 = scmp.eq.s32.totalorder %s24, 1
      %p103 = por %p101, %p102
      %p104 = scmp.ne.s32.totalorder %s95, %s96
      %p105 = scmp.eq.s32.totalorder %s24, 0
      %p106 = por %p104, %p105
      %p107 = scmp.ne.s32.totalorder %s95, %s96
      %p108 = scmp.eq.s32.totalorder %s25, 1
      %p109 = por %p107, %p108
      %p111 = scmp.ne.s32.totalorder %s96, %s110
      %p112 = scmp.eq.s32.totalorder %s25, 0
      %p113 = por %p111, %p112
      %s115 = sadd.s32 %s114, 1
      %p118 = scmp.eq.s32.totalorder %s19, 1
      %p119 = scmp.ne.s32.totalorder %s114, %s116
      %p120 = scmp.eq.s32.totalorder %s19, 0
      %p121 = por %p119, %p120
      %p122 = scmp.ne.s32.totalorder %s114, %s116
      %p123 = scmp.eq.s32.totalorder %s24, 1
      %p124 = por %p122, %p123
      %p125 = scmp.ne.s32.totalorder %s116, %s117
      %p126 = scmp.eq.s32.totalorder %s24, 0
      %p127 = por %p125, %p126
      %p128 = scmp.ne.s32.totalorder %s116, %s117
      %p129 = scmp.eq.s32.totalorder %s25, 1
      %p130 = por %p128, %p129
      %p132 = scmp.ne.s32.totalorder %s117, %s131
      %p133 = scmp.eq.s32.totalorder %s25, 0
      %p134 = por %p132, %p133
      %s135 = ssub.s32 %s26, %s38
      %s136 = ssub.s32 %s27, %s34
      %s137 = sor.u32 %s135, %s136
      %p138 = scmp.eq.s32.totalorder %s137, 0
      %s140 = sadd.s32 %s139, 1
      %s141 = scalar_select %p138, %s139, %s140
      %p144 = pneg %p138
      %p145 = scmp.eq.s32.totalorder %s19, 1
      %p146 = por %p144, %p145
      %p147 = scmp.ne.s32.totalorder %s139, %s142
      %p148 = scmp.eq.s32.totalorder %s19, 0
      %p149 = por %p147, %p148
      %p150 = scmp.ne.s32.totalorder %s139, %s142
      %p151 = scmp.eq.s32.totalorder %s24, 1
      %p152 = por %p150, %p151
      %p153 = scmp.ne.s32.totalorder %s142, %s143
      %p154 = scmp.eq.s32.totalorder %s24, 0
      %p155 = por %p153, %p154
      %p156 = scmp.ne.s32.totalorder %s142, %s143
      %p157 = scmp.eq.s32.totalorder %s25, 1
      %p158 = por %p156, %p157
      %p160 = scmp.ne.s32.totalorder %s143, %s159
      %p161 = scmp.eq.s32.totalorder %s25, 0
      %p162 = por %p160, %p161
      %p163 = scmp.le.s32.totalorder 1, %s19
      %p164 = scmp.lt.s32.totalorder %s19, 3
      %p165 = pnand %p163, %p164
      %p166 = pneg %p165
      // Predicated region
      $region9: #{tpu_custom_call.1} parent=5 // pred_check
        _
      $region10: #{tpu_custom_call.1} parent=5 // pred_check_branch
        %168 = sbr.rel (%p165) target = $region12
      $region11: #{tpu_custom_call.1} parent=5 // pred_region
        %s169 = ssub.s32 %s19, 1
        // Predicated region
        $region13: #{tpu_custom_call.1} parent=11 // pred_check
          %p170 = pneg %p106
        $region14: #{tpu_custom_call.1} parent=11 // pred_check_branch
          %172 = sbr.rel (%p170) target = $region16
        $region15: #{tpu_custom_call.1} parent=11 // pred_region
          %s174 = ssub.s32 256, 256
          %175 = vsyncadd [#allocation7], %s174
          %s176 = sshll.u32 [#allocation8], 4
          %s177 = int_to_ptr.vmem [resolvable:$true] %s176
          %182 = dma.hbm_to_vmem [thread:$0]  %s2, 256, %s177, [#allocation7], 64, 64, 4
        $region16: #{tpu_custom_call.1} parent=11 // pred_fallthru
          _
        // Predicated region
        $region17: #{tpu_custom_call.1} parent=11 // pred_check
          %p183 = pneg %p127
        $region18: #{tpu_custom_call.1} parent=11 // pred_check_branch
          %185 = sbr.rel (%p183) target = $region20
        $region19: #{tpu_custom_call.1} parent=11 // pred_region
          _
        $region20: #{tpu_custom_call.1} parent=11 // pred_fallthru
          _
      $region12: #{tpu_custom_call.1} parent=5 // pred_fallthru
        _
      %p186 = scmp.lt.s32.totalorder %s19, 2
      // Predicated region
      $region21: #{tpu_custom_call.1} parent=5 // pred_check
        %p187 = pneg %p186
      $region22: #{tpu_custom_call.1} parent=5 // pred_check_branch
        %189 = sbr.rel (%p187) target = $region24
      $region23: #{tpu_custom_call.1} parent=5 // pred_region
        // Predicated region
        $region25: #{tpu_custom_call.1} parent=23 // pred_check
          %p190 = pneg %p53
        $region26: #{tpu_custom_call.1} parent=23 // pred_check_branch
          %192 = sbr.rel (%p190) target = $region28
        $region27: #{tpu_custom_call.1} parent=23 // pred_region
          %s193 = sand.u32 %s43, 1
          %s194 = scalar_lea.sflag [#allocation4], %s193
          %s195 = sand.u32 %s43, 1
          %s196 = smul.addr %s195, 16
          %s197 = scalar_lea.vmem [#allocation3], %s196
          %s198 = smul.u32 2, %s27
          %s200 = ssub.s32 256, 256
          %201 = vsyncadd %s194, %s200
          %s202 = smul.addr %s26, 2
          %s203 = sadd.s32 %s198, %s202
          %s204 = smul.addr %s203, 128
          %s205 = scalar_lea.hbm %s0, %s204
          %s206 = sshll.u32 %s197, 4
          %s207 = int_to_ptr.vmem [resolvable:$true] %s206
          %212 = dma.hbm_to_vmem [thread:$0]  %s205, 256, %s207, %s194, 128, 128, 8
        $region28: #{tpu_custom_call.1} parent=23 // pred_fallthru
          _
        // Predicated region
        $region29: #{tpu_custom_call.1} parent=23 // pred_check
          %p213 = pneg %p79
        $region30: #{tpu_custom_call.1} parent=23 // pred_check_branch
          %215 = sbr.rel (%p213) target = $region32
        $region31: #{tpu_custom_call.1} parent=23 // pred_region
          %s216 = sand.u32 %s19, 1
          %s217 = scalar_lea.sflag [#allocation7], %s216
          %s218 = sand.u32 %s69, 1
          %s219 = smul.addr %s218, 16
          %s220 = scalar_lea.vmem [#allocation6], %s219
          %s222 = ssub.s32 256, 256
          %223 = vsyncadd %s217, %s222
          %s224 = smul.addr %s26, 2
          %s225 = smul.addr %s224, 128
          %s226 = scalar_lea.hbm %s1, %s225
          %s227 = sshll.u32 %s220, 4
          %s228 = int_to_ptr.vmem [resolvable:$true] %s227
          %233 = dma.hbm_to_vmem [thread:$0]  %s226, 256, %s228, %s217, 128, 128, 8
        $region32: #{tpu_custom_call.1} parent=23 // pred_fallthru
          _
      $region24: #{tpu_custom_call.1} parent=5 // pred_fallthru
        _
      %p234 = scmp.le.s32.totalorder 1, %s19
      %p235 = scmp.lt.s32.totalorder %s19, 3
      %p236 = pnand %p234, %p235
      %p237 = pneg %p236
      // Predicated region
      $region33: #{tpu_custom_call.1} parent=5 // pred_check
        _
      $region34: #{tpu_custom_call.1} parent=5 // pred_check_branch
        %239 = sbr.rel (%p236) target = $region36
      $region35: #{tpu_custom_call.1} parent=5 // pred_region
        %s240 = ssub.s32 %s19, 1
        %s241 = sand.u32 %s46, 1
        %s242 = scalar_lea.sflag [#allocation4], %s241
        %s243 = sand.u32 %s46, 1
        %s244 = smul.addr %s243, 16
        %s245 = scalar_lea.vmem [#allocation3], %s244
        // Predicated region
        $region37: #{tpu_custom_call.1} parent=35 // pred_check
          %p246 = pneg %p59
        $region38: #{tpu_custom_call.1} parent=35 // pred_check_branch
          %248 = sbr.rel (%p246) target = $region40
        $region39: #{tpu_custom_call.1} parent=35 // pred_region
          %249 = dma.done %s242, 256
        $region40: #{tpu_custom_call.1} parent=35 // pred_fallthru
          _
        %s250 = sand.u32 %s24, 1
        %s251 = scalar_lea.sflag [#allocation7], %s250
        %s252 = sand.u32 %s72, 1
        %s253 = smul.addr %s252, 16
        %s254 = scalar_lea.vmem [#allocation6], %s253
        // Predicated region
        $region41: #{tpu_custom_call.1} parent=35 // pred_check
          %p255 = pneg %p85
        $region42: #{tpu_custom_call.1} parent=35 // pred_check_branch
          %257 = sbr.rel (%p255) target = $region44
        $region43: #{tpu_custom_call.1} parent=35 // pred_region
          %258 = dma.done %s251, 256
        $region44: #{tpu_custom_call.1} parent=35 // pred_fallthru
          _
        // Predicated region
        $region45: #{tpu_custom_call.1} parent=35 // pred_check
          %p259 = pneg %p106
        $region46: #{tpu_custom_call.1} parent=35 // pred_check_branch
          %261 = sbr.rel (%p259) target = $region48
        $region47: #{tpu_custom_call.1} parent=35 // pred_region
          %262 = dma.done [#allocation7], 256
        $region48: #{tpu_custom_call.1} parent=35 // pred_fallthru
          _
        %s263 = sand.u32 %s46, 1
        %s264 = scalar_lea.sflag [#allocation4], %s263
        %s265 = sand.u32 %s46, 1
        %s266 = smul.addr %s265, 16
        %s267 = scalar_lea.vmem [#allocation3], %s266
        %p268 = pneg %p59
        %p269 = pneg %p56
        %s270 = sand.u32 %s24, 1
        %s271 = scalar_lea.sflag [#allocation7], %s270
        %s272 = sand.u32 %s72, 1
        %s273 = smul.addr %s272, 16
        %s274 = scalar_lea.vmem [#allocation6], %s273
        %p275 = pneg %p85
        %p276 = pneg %p82
        %p277 = pneg %p106
        %p278 = pneg %p103
        %p279 = pneg %p127
        %p280 = pneg %p124
        %p281 = pneg %p155
        %p282 = pneg %p152
        %s283 = sand.u32 %s142, 1
        %s284 = scalar_lea.sflag [#allocation5], %s283
        %s285 = sand.u32 %s142, 1
        %s286 = smul.addr %s285, 16
        %s287 = scalar_lea.vmem [#allocation9], %s286
        %s288 = smul.u32 2, %s29
        %s289 = smul.u32 2, %s29
        %p291 = scmp.eq.s32.totalorder %s29, 0
        // Predicated region
        $region49: #{tpu_custom_call.1} parent=35 // pred_check
          %p292 = pneg %p291
        $region50: #{tpu_custom_call.1} parent=35 // pred_check_branch
          %294 = sbr.rel (%p292) target = $region52
        $region51: #{tpu_custom_call.1} parent=35 // pred_region
          %v295 = vld [vmem:[%s254] sm:$0xff]
          %v296 = vld [vmem:[%s254 + $0x8] sm:$0xff]
          %v297 = vpack.c.bf16 %v296, %v295
          %v298 = vld [vmem:[#allocation8] sm:$0xf]
          %v299 = vld [vmem:[#allocation8 + $0x4] sm:$0xf]
          %v300 = vld [vmem:[#allocation8 + $0x8] sm:$0xf]
          %v301 = vld [vmem:[#allocation8 + $0xc] sm:$0xf]
          %v306 = vunpack.c.l.b16 %v298
          %v307 = vunpack.c.l.b16 %v299
          %v308 = vunpack.c.l.b16 %v300
          %v309 = vunpack.c.l.b16 %v301
          %v310 = vpack.c.b16 %v307, %v306
          %v311 = vpack.c.b16 %v309, %v308
          %vm314 = vcmask 261120
          %v316 = vsel %vm314, %v297, 0
          %318 = vmatprep.subr.bf16.mxu0 0
          %319 = vmatpush1.bf16.msra.mxu0 %v310
          %320 = vmatprep.subr.bf16.mxu0 0
          %321 = vmatpush1.bf16.msra.mxu0 %v311
          %322 = vmatprep.subr.bf16.mxu0 0
          %323 = vmatpush1.bf16.msra.mxu0 0
          %324 = vmatprep.subr.bf16.mxu0 0
          %325 = vmatpush1.bf16.msra.mxu0 0
          %326 = vmatprep.subr.bf16.mxu0 0
          %327 = vmatpush1.bf16.msra.mxu0 0
          %328 = vmatprep.subr.bf16.mxu0 0
          %329 = vmatpush1.bf16.msra.mxu0 0
          %330 = vmatprep.subr.bf16.mxu0 0
          %331 = vmatpush1.bf16.msra.mxu0 0
          %332 = vmatprep.subr.bf16.mxu0 0
          %333 = vmatpush1.bf16.msra.mxu0 0
          %334 = vmatprep.subr.bf16.mxu0 0
          %335 = vmatpush1.bf16.msra.mxu0 0
          %336 = vmatprep.subr.bf16.mxu0 0
          %337 = vmatpush1.bf16.msra.mxu0 0
          %338 = vmatprep.subr.bf16.mxu0 0
          %339 = vmatpush1.bf16.msra.mxu0 0
          %340 = vmatprep.subr.bf16.mxu0 0
          %341 = vmatpush1.bf16.msra.mxu0 0
          %342 = vmatprep.subr.bf16.mxu0 0
          %343 = vmatpush1.bf16.msra.mxu0 0
          %344 = vmatprep.subr.bf16.mxu0 0
          %345 = vmatpush1.bf16.msra.mxu0 0
          %346 = vmatprep.subr.bf16.mxu0 0
          %347 = vmatpush1.bf16.msra.mxu0 0
          %348 = vmatprep.subr.bf16.mxu0 0
          %349 = vmatpush1.bf16.msra.mxu0 0
          %350 = vmatprep.mubr.bf16.mxu0 0
          %351 = vmatmul.mubr.bf16.gmra.mrb[0].mxu0 %v316
          %v352 = vpop.f32.mrb[0].mxu0
          %v353 = vadd.f32 0.0, %v352
          %v354 = vpop.f32.mrb[0].mxu0
          %v355 = vpop.f32.mrb[0].mxu0
          %v356 = vadd.f32 0.0, %v355
          %v357 = vpop.f32.mrb[0].mxu0
          %358 = vdwg.mxu0
          %v359 = vpack.c.bf16 %v356, %v353
          %360 = vst.msk [vmem:[#allocation2] sm:$0xff] %vm314, %v359
        $region52: #{tpu_custom_call.1} parent=35 // pred_fallthru
          _
        %v361 = vld [vmem:[%s245] sm:$0xff]
        %v362 = vld [vmem:[%s245 + $0x8] sm:$0xff]
        %v363 = vpack.c.bf16 %v362, %v361
        %v364 = vld [vmem:[#allocation2] sm:$0xff]
        %v365 = vld [vmem:[%s3] sm:$0x1]
        %v367 = vlaneseq
        %v368 = vshrl.u32 %v367, 7
        %v369 = vsub.s32 0, %v368
        %v370 = vrot.slane %v365, %v369
        %vm372 = vcmask 130048
        %v374 = vsel %vm372, %v363, 0
        %376 = vmatprep.subr.bf16.mxu0 0
        %377 = vmatpush1.bf16.msra.mxu0 %v364
        %378 = vmatprep.subr.bf16.mxu0 0
        %379 = vmatpush1.bf16.msra.mxu0 0
        %380 = vmatprep.subr.bf16.mxu0 0
        %381 = vmatpush1.bf16.msra.mxu0 0
        %382 = vmatprep.subr.bf16.mxu0 0
        %383 = vmatpush1.bf16.msra.mxu0 0
        %384 = vmatprep.subr.bf16.mxu0 0
        %385 = vmatpush1.bf16.msra.mxu0 0
        %386 = vmatprep.subr.bf16.mxu0 0
        %387 = vmatpush1.bf16.msra.mxu0 0
        %388 = vmatprep.subr.bf16.mxu0 0
        %389 = vmatpush1.bf16.msra.mxu0 0
        %390 = vmatprep.subr.bf16.mxu0 0
        %391 = vmatpush1.bf16.msra.mxu0 0
        %392 = vmatprep.subr.bf16.mxu0 0
        %393 = vmatpush1.bf16.msra.mxu0 0
        %394 = vmatprep.subr.bf16.mxu0 0
        %395 = vmatpush1.bf16.msra.mxu0 0
        %396 = vmatprep.subr.bf16.mxu0 0
        %397 = vmatpush1.bf16.msra.mxu0 0
        %398 = vmatprep.subr.bf16.mxu0 0
        %399 = vmatpush1.bf16.msra.mxu0 0
        %400 = vmatprep.subr.bf16.mxu0 0
        %401 = vmatpush1.bf16.msra.mxu0 0
        %402 = vmatprep.subr.bf16.mxu0 0
        %403 = vmatpush1.bf16.msra.mxu0 0
        %404 = vmatprep.subr.bf16.mxu0 0
        %405 = vmatpush1.bf16.msra.mxu0 0
        %406 = vmatprep.subr.bf16.mxu0 0
        %407 = vmatpush1.bf16.msra.mxu0 0
        %408 = vmatprep.mubr.bf16.mxu0 0
        %409 = vmatmul.mubr.bf16.gmra.mrb[0].mxu0 %v374
        %v410 = vpop.f32.mrb[0].mxu0
        %v411 = vadd.f32 %v370, %v410
        %v412 = vpop.f32.mrb[0].mxu0
        %v413 = vpop.f32.mrb[0].mxu0
        %v414 = vadd.f32 %v370, %v413
        %v415 = vpop.f32.mrb[0].mxu0
        %416 = vdwg.mxu0
        %vm417 = vcmask 261120
        %418 = vst.msk [vmem:[%s287] sm:$0xff] %vm417, %v411
        %419 = vst.msk [vmem:[%s287 + $0x8] sm:$0xff] %vm417, %v414
        %s420 = sand.u32 %s142, 1
        %s421 = scalar_lea.sflag [#allocation5], %s420
        %s422 = sand.u32 %s142, 1
        %s423 = smul.addr %s422, 16
        %s424 = scalar_lea.vmem [#allocation9], %s423
        // Predicated region
        $region53: #{tpu_custom_call.1} parent=35 // pred_check
          %p425 = pneg %p152
        $region54: #{tpu_custom_call.1} parent=35 // pred_check_branch
          %427 = sbr.rel (%p425) target = $region56
        $region55: #{tpu_custom_call.1} parent=35 // pred_region
          %s428 = smul.u32 2, %s29
          %s430 = ssub.s32 256, 256
          %431 = vsyncadd %s421, %s430
          %s432 = smul.addr %s28, 2
          %s433 = sadd.s32 %s428, %s432
          %s434 = smul.addr %s433, 128
          %s435 = scalar_lea.hbm %s4, %s434
          %s436 = sshll.u32 %s424, 4
          %s437 = int_to_ptr.vmem [resolvable:$true] %s436
          %442 = dma.vmem_to_hbm [thread:$0]  %s437, 256, %s435, %s421, 128, 128, 8
        $region56: #{tpu_custom_call.1} parent=35 // pred_fallthru
          _
      $region36: #{tpu_custom_call.1} parent=5 // pred_fallthru
        _
      %p443 = scmp.le.s32.totalorder 2, %s19
      // Predicated region
      $region57: #{tpu_custom_call.1} parent=5 // pred_check
        %p444 = pneg %p443
      $region58: #{tpu_custom_call.1} parent=5 // pred_check_branch
        %446 = sbr.rel (%p444) target = $region60
      $region59: #{tpu_custom_call.1} parent=5 // pred_region
        %s447 = ssub.s32 %s19, 2
        // Predicated region
        $region61: #{tpu_custom_call.1} parent=59 // pred_check
          %p448 = pneg %p158
        $region62: #{tpu_custom_call.1} parent=59 // pred_check_branch
          %450 = sbr.rel (%p448) target = $region64
        $region63: #{tpu_custom_call.1} parent=59 // pred_region
          %s451 = sand.u32 %s143, 1
          %s452 = scalar_lea.sflag [#allocation5], %s451
          %s453 = sand.u32 %s143, 1
          %s454 = smul.addr %s453, 16
          %s455 = scalar_lea.vmem [#allocation9], %s454
          %456 = dma.done %s452, 256
        $region64: #{tpu_custom_call.1} parent=59 // pred_fallthru
          _
      $region60: #{tpu_custom_call.1} parent=5 // pred_fallthru
        _
    $region6: #{tpu_custom_call.1} parent=1 // loop_footer
      %s23 = sadd.s32 1, %s19
    $region7: #{tpu_custom_call.1} parent=1 // loop_footer_branch
      %18 = sbr.rel target = $region3
    $region8: #{tpu_custom_call.1} parent=1 // loop_exit
      _
    %457 = vsyncpa [#allocation4], 1
    %s458 = scalar_lea.sflag [#allocation4], 1
    %459 = vsyncpa %s458, 1
    %460 = vsyncpa [#allocation7], 1
    %s461 = scalar_lea.sflag [#allocation7], 1
    %462 = vsyncpa %s461, 1
    %463 = vsyncpa [#allocation5], 1
    %s464 = scalar_lea.sflag [#allocation5], 1
    %465 = vsyncpa %s464, 1

</llo_original>
